<compile_context>
chip_gen: v7x
topology: tpu7x:2x2x1
jax: 0.10.0
libtpu: 0.0.40
codegen_flags: <defaults>
</compile_context>

<pallas_src>
import jax
import jax.numpy as jnp
from jax.experimental import pallas as pl
from jax.experimental.pallas import tpu as pltpu


def mlp_kernel(x_ref, w1_ref, b1_ref, w2_ref, b2_ref, w3_ref, b3_ref, o_ref):
    # x_ref: (8, TB)   weights: (16,8), (4,16), (1,4)   biases: (16,1), (4,1), (1,1)
    x = x_ref[...]
    # fc1 + tanh  -> (16, TB)
    h1 = jnp.tanh(
        jnp.dot(w1_ref[...], x, preferred_element_type=jnp.float32) + b1_ref[...]
    )
    # fc2 + sigmoid -> (4, TB)
    h2 = jax.nn.sigmoid(
        jnp.dot(w2_ref[...], h1, preferred_element_type=jnp.float32) + b2_ref[...]
    )
    # fc3 (no activation) -> (1, TB), lane-dense store
    o_ref[...] = (
        jnp.dot(w3_ref[...], h2, preferred_element_type=jnp.float32) + b3_ref[...]
    )


def neural_net_forward(x, params, *, batch_tile=1024):
    """x: (B, 8) float32.  params: PyTorch-native (out,in) weights, (out,1) biases."""
    w1, b1, w2, b2, w3, b3 = params
    B = x.shape[0]

    # Transpose so batch is on the lane axis, pad batch up to a lane-aligned tile.
    xt = x.T  # (8, B)
    tb = min(batch_tile, pl.cdiv(B, 128) * 128)   # tile is a multiple of 128 lanes
    padded_B = pl.cdiv(B, tb) * tb
    if padded_B != B:
        xt = jnp.pad(xt, ((0, 0), (0, padded_B - B)))
    grid = (padded_B // tb,)

    def const_spec(shape):
        return pl.BlockSpec(shape, lambda i: (0, 0))   # weights stay VMEM-resident

    cost = pl.CostEstimate(
        flops=2 * padded_B * (8 * 16 + 16 * 4 + 4 * 1),
        transcendentals=padded_B * (16 + 4),
        bytes_accessed=4 * (padded_B * (8 + 1) + (16 * 8 + 16 + 4 * 16 + 4 + 4 + 1)),
    )

    out_t = pl.pallas_call(
        mlp_kernel,
        out_shape=jax.ShapeDtypeStruct((1, padded_B), jnp.float32),
        grid_spec=pltpu.PrefetchScalarGridSpec(
            num_scalar_prefetch=0,
            grid=grid,
            in_specs=[
                pl.BlockSpec((8, tb), lambda i: (0, i)),   # x tile streams from HBM
                const_spec((16, 8)),  const_spec((16, 1)),
                const_spec((4, 16)),  const_spec((4, 1)),
                const_spec((1, 4)),   const_spec((1, 1)),
            ],
            out_specs=pl.BlockSpec((1, tb), lambda i: (0, i)),
        ),
        compiler_params=pltpu.CompilerParams(
            dimension_semantics=("parallel",),   # shards batch tiles across TCs (v7x)
        ),
        cost_estimate=cost,
    )(xt, w1, b1, w2, b2, w3, b3)

    # Drop batch padding and return in PyTorch layout (B, 1).
    return out_t[:, :B].T


def init_params(key):
    # Mimics nn.Linear's uniform(-1/sqrt(in), 1/sqrt(in)); PyTorch-native shapes:
    # weight (out, in), bias stored as (out, 1) for lane-broadcast inside the kernel.
    def linear(key, fan_in, fan_out):
        kw, kb = jax.random.split(key)
        bound = 1.0 / jnp.sqrt(fan_in)
        w = jax.random.uniform(kw, (fan_out, fan_in), jnp.float32, -bound, bound)
        b = jax.random.uniform(kb, (fan_out, 1), jnp.float32, -bound, bound)
        return w, b

    k1, k2, k3 = jax.random.split(key, 3)
    w1, b1 = linear(k1, 8, 16)
    w2, b2 = linear(k2, 16, 4)
    w3, b3 = linear(k3, 4, 1)
    return (w1, b1, w2, b2, w3, b3)


if __name__ == "__main__":
    key = jax.random.PRNGKey(0)
    k_params, k_x = jax.random.split(key)
    params = init_params(k_params)

    batch = 8
    x = jax.random.normal(k_x, (batch, 8), dtype=jnp.float32)

    out = neural_net_forward(x, params)
    out = jax.block_until_ready(out)

    # Reference check in plain JAX (PyTorch layout: y = act(x @ W.T + b)).
    w1, b1, w2, b2, w3, b3 = params
    h = jnp.tanh(x @ w1.T + b1.T)
    h = jax.nn.sigmoid(h @ w2.T + b2.T)
    ref = h @ w3.T + b3.T

    assert out.shape == (batch, 1)
    assert jnp.allclose(out, ref, atol=1e-3, rtol=1e-3), "mismatch vs reference"

    print("KERNEL_OK")
</pallas_src>

<mosaic_0001>
module attributes {stable_mosaic.version = 11 : i64} {
  func.func @mlp_kernel(%arg0: i32, %arg1: memref<8x128xf32, #tpu.memory_space<vmem>>, %arg2: memref<16x8xf32, #tpu.memory_space<vmem>>, %arg3: memref<16x1xf32, #tpu.memory_space<vmem>>, %arg4: memref<4x16xf32, #tpu.memory_space<vmem>>, %arg5: memref<4x1xf32, #tpu.memory_space<vmem>>, %arg6: memref<1x4xf32, #tpu.memory_space<vmem>>, %arg7: memref<1x1xf32, #tpu.memory_space<vmem>>, %arg8: memref<1x128xf32, #tpu.memory_space<vmem>>) attributes {dimension_semantics = [#tpu.dimension_semantics<parallel>], iteration_bounds = array<i64: 1>, scalar_prefetch = 0 : i64, scratch_operands = 0 : i64, tpu.core_type = #tpu.core_type<tc>, window_params = [{transform_indices = @transform_0, window_bounds = array<i64: 8, 128>}, {pipeline_mode = #tpu.pipeline_mode<synchronous>, transform_indices = @transform_1, window_bounds = array<i64: 16, 8>}, {pipeline_mode = #tpu.pipeline_mode<synchronous>, transform_indices = @transform_2, window_bounds = array<i64: 16, 1>}, {pipeline_mode = #tpu.pipeline_mode<synchronous>, transform_indices = @transform_3, window_bounds = array<i64: 4, 16>}, {pipeline_mode = #tpu.pipeline_mode<synchronous>, transform_indices = @transform_4, window_bounds = array<i64: 4, 1>}, {pipeline_mode = #tpu.pipeline_mode<synchronous>, transform_indices = @transform_5, window_bounds = array<i64: 1, 4>}, {pipeline_mode = #tpu.pipeline_mode<synchronous>, transform_indices = @transform_6, window_bounds = array<i64: 1, 1>}, {transform_indices = @transform_7, window_bounds = array<i64: 1, 128>}]} {
    %c0 = arith.constant 0 : index
    %c0_0 = arith.constant 0 : index
    %0 = vector.load %arg1[%c0, %c0_0] : memref<8x128xf32, #tpu.memory_space<vmem>>, vector<8x128xf32>
    %c0_1 = arith.constant 0 : index
    %c0_2 = arith.constant 0 : index
    %1 = vector.load %arg2[%c0_1, %c0_2] : memref<16x8xf32, #tpu.memory_space<vmem>>, vector<16x8xf32>
    %cst = arith.constant dense<0.000000e+00> : vector<16x128xf32>
    %2 = tpu.matmul %1, %0, %cst {dimension_numbers = #tpu.dot_dimension_numbers<[1], [0], [0], [1], [0, 0, 1, 1], [], []>} : vector<16x8xf32>, vector<8x128xf32>, vector<16x128xf32> -> vector<16x128xf32>
    %c0_3 = arith.constant 0 : index
    %c0_4 = arith.constant 0 : index
    %3 = vector.load %arg3[%c0_3, %c0_4] : memref<16x1xf32, #tpu.memory_space<vmem>>, vector<16x1xf32>
    %4 = vector.broadcast %3 : vector<16x1xf32> to vector<16x128xf32>
    %5 = arith.addf %2, %4 : vector<16x128xf32>
    %6 = math.tanh %5 : vector<16x128xf32>
    %c0_5 = arith.constant 0 : index
    %c0_6 = arith.constant 0 : index
    %7 = vector.load %arg4[%c0_5, %c0_6] : memref<4x16xf32, #tpu.memory_space<vmem>>, vector<4x16xf32>
    %cst_7 = arith.constant dense<0.000000e+00> : vector<4x128xf32>
    %8 = tpu.matmul %7, %6, %cst_7 {dimension_numbers = #tpu.dot_dimension_numbers<[1], [0], [0], [1], [0, 0, 1, 1], [], []>} : vector<4x16xf32>, vector<16x128xf32>, vector<4x128xf32> -> vector<4x128xf32>
    %c0_8 = arith.constant 0 : index
    %c0_9 = arith.constant 0 : index
    %9 = vector.load %arg5[%c0_8, %c0_9] : memref<4x1xf32, #tpu.memory_space<vmem>>, vector<4x1xf32>
    %10 = vector.broadcast %9 : vector<4x1xf32> to vector<4x128xf32>
    %11 = arith.addf %8, %10 : vector<4x128xf32>
    %12 = arith.negf %11 : vector<4x128xf32>
    %13 = math.exp %12 : vector<4x128xf32>
    %cst_10 = arith.constant 1.000000e+00 : f32
    %14 = vector.broadcast %cst_10 : f32 to vector<4x128xf32>
    %15 = arith.addf %14, %13 : vector<4x128xf32>
    %16 = arith.divf %14, %15 : vector<4x128xf32>
    %c0_11 = arith.constant 0 : index
    %c0_12 = arith.constant 0 : index
    %17 = vector.load %arg6[%c0_11, %c0_12] : memref<1x4xf32, #tpu.memory_space<vmem>>, vector<1x4xf32>
    %cst_13 = arith.constant dense<0.000000e+00> : vector<1x128xf32>
    %18 = tpu.matmul %17, %16, %cst_13 {dimension_numbers = #tpu.dot_dimension_numbers<[1], [0], [0], [1], [0, 0, 1, 1], [], []>} : vector<1x4xf32>, vector<4x128xf32>, vector<1x128xf32> -> vector<1x128xf32>
    %c0_14 = arith.constant 0 : index
    %c0_15 = arith.constant 0 : index
    %19 = vector.load %arg7[%c0_14, %c0_15] : memref<1x1xf32, #tpu.memory_space<vmem>>, vector<1x1xf32>
    %20 = vector.broadcast %19 : vector<1x1xf32> to vector<1x128xf32>
    %21 = arith.addf %18, %20 : vector<1x128xf32>
    %c0_16 = arith.constant 0 : index
    %c0_17 = arith.constant 0 : index
    %22 = vector.load %arg8[%c0_16, %c0_17] : memref<1x128xf32, #tpu.memory_space<vmem>>, vector<1x128xf32>
    tpu.vector_store %arg8[%c0_16, %c0_17], %21 {strides = array<i32>} : memref<1x128xf32, #tpu.memory_space<vmem>>, vector<1x128xf32>,
    return
  }
  func.func @transform_0(%arg0: i32) -> (i32, i32) {
    %c0_i32 = arith.constant 0 : i32
    %c0_i32_0 = arith.constant 0 : i32
    return %c0_i32, %arg0 : i32, i32
  }
  func.func @transform_1(%arg0: i32) -> (i32, i32) {
    %c0_i32 = arith.constant 0 : i32
    %c0_i32_0 = arith.constant 0 : i32
    %c0_i32_1 = arith.constant 0 : i32
    return %c0_i32, %c0_i32_0 : i32, i32
  }
  func.func @transform_2(%arg0: i32) -> (i32, i32) {
    %c0_i32 = arith.constant 0 : i32
    %c0_i32_0 = arith.constant 0 : i32
    %c0_i32_1 = arith.constant 0 : i32
    return %c0_i32, %c0_i32_0 : i32, i32
  }
  func.func @transform_3(%arg0: i32) -> (i32, i32) {
    %c0_i32 = arith.constant 0 : i32
    %c0_i32_0 = arith.constant 0 : i32
    %c0_i32_1 = arith.constant 0 : i32
    return %c0_i32, %c0_i32_0 : i32, i32
  }
  func.func @transform_4(%arg0: i32) -> (i32, i32) {
    %c0_i32 = arith.constant 0 : i32
    %c0_i32_0 = arith.constant 0 : i32
    %c0_i32_1 = arith.constant 0 : i32
    return %c0_i32, %c0_i32_0 : i32, i32
  }
  func.func @transform_5(%arg0: i32) -> (i32, i32) {
    %c0_i32 = arith.constant 0 : i32
    %c0_i32_0 = arith.constant 0 : i32
    %c0_i32_1 = arith.constant 0 : i32
    return %c0_i32, %c0_i32_0 : i32, i32
  }
  func.func @transform_6(%arg0: i32) -> (i32, i32) {
    %c0_i32 = arith.constant 0 : i32
    %c0_i32_0 = arith.constant 0 : i32
    %c0_i32_1 = arith.constant 0 : i32
    return %c0_i32, %c0_i32_0 : i32, i32
  }
  func.func @transform_7(%arg0: i32) -> (i32, i32) {
    %c0_i32 = arith.constant 0 : i32
    %c0_i32_0 = arith.constant 0 : i32
    return %c0_i32, %arg0 : i32, i32
  }
}

</mosaic_0001>

<llo_original>
// kernel: tpu_custom_call.1
$region0: #{tpu_custom_call.1}
  #allocation0 [shape = 'u32[]', space=smem, size = 0x4, offset = 0x4, fixed_abs, tag = 'smem constant byte address 0x4 - core index']
  #allocation1 [shape = 'u32[144,128]{1,0:T(1,128)}', space=vmem, size = 0x12000, scoped, tag = 'internal scratch']
  #allocation2 [shape = 'f32[1,1]{1,0:T(1,128)S(1)}', space=vmem, size = 0x200, scoped, tag = 'scoped memory for tpu_custom_call.1']
  %s0 = inlined_call_operand.vmem [shape: f32[8,128], index: 0, kind: input, shape index: {}]
  %s1 = inlined_call_operand.vmem [shape: f32[16,8], index: 1, kind: input, shape index: {}]
  %s2 = inlined_call_operand.vmem [shape: f32[16,1], index: 2, kind: input, shape index: {}]
  %s3 = inlined_call_operand.vmem [shape: f32[4,16], index: 3, kind: input, shape index: {}]
  %s4 = inlined_call_operand.vmem [shape: f32[4,1], index: 4, kind: input, shape index: {}]
  %s5 = inlined_call_operand.vmem [shape: f32[1,4], index: 5, kind: input, shape index: {}]
  %s6 = inlined_call_operand.<no memory space> [shape: f32[1,1], index: 6, kind: input, shape index: {}]
  %s7 = inlined_call_operand.hbm [shape: f32[1,128], index: 7, kind: output, shape index: {}]
  %s8 = sld [smem:[#allocation0]]
  $region38: #{tpu_custom_call.1} parent=0
    _
  %s10 = ssub.s32 1, %s8
  %s11 = scalar_select 0, %s10, %s8
  %v12 = vstv %s6
  %13 = vst [vmem:[#allocation2] sm:$0x1] %v12
  $region1: #{tpu_custom_call.1} parent=0
    #allocation3 [shape = 'u8[512]{0}', space=vmem, size = 0x400, scoped, tag = 'output window, operand 0, single buffered']
    #allocation4 [shape = 's32[1]{0}', space=sflag, size = 0x4, scoped, tag = 'scoped memory for tpu_custom_call.1']
    %14 = vsyncpa [#allocation4], 0
    // Predicated region
    $region2: #{tpu_custom_call.1} parent=1 // pred_check
      _
    $region3: #{tpu_custom_call.1} parent=1 // pred_check_branch
      %16 = sbr.rel (0) target = $region5
    $region4: #{tpu_custom_call.1} parent=1 // pred_region
      _
    $region5: #{tpu_custom_call.1} parent=1 // pred_fallthru
      _
    // Predicated region
    $region6: #{tpu_custom_call.1} parent=1 // pred_check
      _
    $region7: #{tpu_custom_call.1} parent=1 // pred_check_branch
      %18 = sbr.rel (0) target = $region9
    $region8: #{tpu_custom_call.1} parent=1 // pred_region
      _
    $region9: #{tpu_custom_call.1} parent=1 // pred_fallthru
      _
    // Predicated region
    $region10: #{tpu_custom_call.1} parent=1 // pred_check
      _
    $region11: #{tpu_custom_call.1} parent=1 // pred_check_branch
      %20 = sbr.rel (0) target = $region13
    $region12: #{tpu_custom_call.1} parent=1 // pred_region
      _
    $region13: #{tpu_custom_call.1} parent=1 // pred_fallthru
      _
    // Predicated region
    $region14: #{tpu_custom_call.1} parent=1 // pred_check
      _
    $region15: #{tpu_custom_call.1} parent=1 // pred_check_branch
      %22 = sbr.rel (0) target = $region17
    $region16: #{tpu_custom_call.1} parent=1 // pred_region
      _
    $region17: #{tpu_custom_call.1} parent=1 // pred_fallthru
      _
    // Predicated region
    $region18: #{tpu_custom_call.1} parent=1 // pred_check
      _
    $region19: #{tpu_custom_call.1} parent=1 // pred_check_branch
      %24 = sbr.rel (0) target = $region21
    $region20: #{tpu_custom_call.1} parent=1 // pred_region
      _
    $region21: #{tpu_custom_call.1} parent=1 // pred_fallthru
      _
    // Predicated region
    $region22: #{tpu_custom_call.1} parent=1 // pred_check
      _
    $region23: #{tpu_custom_call.1} parent=1 // pred_check_branch
      %26 = sbr.rel (0) target = $region25
    $region24: #{tpu_custom_call.1} parent=1 // pred_region
      _
    $region25: #{tpu_custom_call.1} parent=1 // pred_fallthru
      _
    // Predicated region
    $region26: #{tpu_custom_call.1} parent=1 // pred_check
      _
    $region27: #{tpu_custom_call.1} parent=1 // pred_check_branch
      %28 = sbr.rel (0) target = $region29
    $region28: #{tpu_custom_call.1} parent=1 // pred_region
      _
    $region29: #{tpu_custom_call.1} parent=1 // pred_fallthru
      _
    %v29 = vld [vmem:[%s0] sm:$0xff]
    %v30 = vld [vmem:[%s1] sm:$0xff]
    %v31 = vld [vmem:[%s1 + $0x8] sm:$0xff]
    %v32 = vld [vmem:[%s2] sm:$0xff]
    %v33 = vld [vmem:[%s2 + $0x8] sm:$0xff]
    %35 = vset.pattern.permute.xlu0 0
    %36 = vperm.xlu0 %35, %v32
    %v37 = vpop.permute.xlu0 %36
    %40 = vset.pattern.permute.xlu0 0
    %41 = vperm.xlu0 %40, %v33
    %v42 = vpop.permute.xlu0 %41
    %vm44 = vcmask 64512
    %v46 = vsel %vm44, %v30, 0
    %v49 = vsel %vm44, %v31, 0
    %51 = vmatprep.subr.mxu0 0.0
    %52 = vmatpush1.msra.mxu0 %v29
    %53 = vmatprep.subr.mxu0 0.0
    %54 = vmatpush1.msra.mxu0 0.0
    %55 = vmatprep.subr.mxu0 0.0
    %56 = vmatpush1.msra.mxu0 0.0
    %57 = vmatprep.subr.mxu0 0.0
    %58 = vmatpush1.msra.mxu0 0.0
    %59 = vmatprep.subr.mxu0 0.0
    %60 = vmatpush1.msra.mxu0 0.0
    %61 = vmatprep.subr.mxu0 0.0
    %62 = vmatpush1.msra.mxu0 0.0
    %63 = vmatprep.subr.mxu0 0.0
    %64 = vmatpush1.msra.mxu0 0.0
    %65 = vmatprep.subr.mxu0 0.0
    %66 = vmatpush1.msra.mxu0 0.0
    %67 = vmatprep.subr.mxu0 0.0
    %68 = vmatpush1.msra.mxu0 0.0
    %69 = vmatprep.subr.mxu0 0.0
    %70 = vmatpush1.msra.mxu0 0.0
    %71 = vmatprep.subr.mxu0 0.0
    %72 = vmatpush1.msra.mxu0 0.0
    %73 = vmatprep.subr.mxu0 0.0
    %74 = vmatpush1.msra.mxu0 0.0
    %75 = vmatprep.subr.mxu0 0.0
    %76 = vmatpush1.msra.mxu0 0.0
    %77 = vmatprep.subr.mxu0 0.0
    %78 = vmatpush1.msra.mxu0 0.0
    %79 = vmatprep.subr.mxu0 0.0
    %80 = vmatpush1.msra.mxu0 0.0
    %81 = vmatprep.subr.mxu0 0.0
    %82 = vmatpush1.msra.mxu0 0.0
    %83 = vmatprep.subr.mxu0 0.0
    %84 = vmatpush1.msra.mxu0 0.0
    %85 = vmatprep.subr.mxu0 0.0
    %86 = vmatpush1.msra.mxu0 0.0
    %87 = vmatprep.subr.mxu0 0.0
    %88 = vmatpush1.msra.mxu0 0.0
    %89 = vmatprep.subr.mxu0 0.0
    %90 = vmatpush1.msra.mxu0 0.0
    %91 = vmatprep.subr.mxu0 0.0
    %92 = vmatpush1.msra.mxu0 0.0
    %93 = vmatprep.subr.mxu0 0.0
    %94 = vmatpush1.msra.mxu0 0.0
    %95 = vmatprep.subr.mxu0 0.0
    %96 = vmatpush1.msra.mxu0 0.0
    %97 = vmatprep.subr.mxu0 0.0
    %98 = vmatpush1.msra.mxu0 0.0
    %99 = vmatprep.subr.mxu0 0.0
    %100 = vmatpush1.msra.mxu0 0.0
    %101 = vmatprep.subr.mxu0 0.0
    %102 = vmatpush1.msra.mxu0 0.0
    %103 = vmatprep.subr.mxu0 0.0
    %104 = vmatpush1.msra.mxu0 0.0
    %105 = vmatprep.subr.mxu0 0.0
    %106 = vmatpush1.msra.mxu0 0.0
    %107 = vmatprep.subr.mxu0 0.0
    %108 = vmatpush1.msra.mxu0 0.0
    %109 = vmatprep.subr.mxu0 0.0
    %110 = vmatpush1.msra.mxu0 0.0
    %111 = vmatprep.subr.mxu0 0.0
    %112 = vmatpush1.msra.mxu0 0.0
    %113 = vmatprep.subr.mxu0 0.0
    %114 = vmatpush1.msra.mxu0 0.0
    %115 = vmatprep.mubr.f32.mxu0 0.0
    %116 = vmatmul.mubr.f32.gmra.mrb[0].mxu0 %v46
    %v117 = vpop.f32.mrb[0].mxu0
    %v118 = vadd.f32 %v37, %v117
    %v119 = vpop.f32.mrb[0].mxu0
    %120 = vmatprep.mubr.f32.mxu0 0.0
    %121 = vmatmul.mubr.f32.gmra.mrb[0].mxu0 %v49
    %v122 = vpop.f32.mrb[0].mxu0
    %v123 = vadd.f32 %v42, %v122
    %v124 = vpop.f32.mrb[0].mxu0
    %125 = vdwg.mxu0
    %v126 = vtanh.pop %v118
    %v127 = vtanh.pop %v123
    %v128 = vld [vmem:[%s3] sm:$0xf]
    %v129 = vld [vmem:[%s4] sm:$0xf]
    %131 = vset.pattern.permute.xlu0 0
    %132 = vperm.xlu0 %131, %v129
    %v133 = vpop.permute.xlu0 %132
    %vm135 = vcmask 130048
    %v137 = vsel %vm135, %v128, 0
    %139 = vmatprep.subr.mxu0 0.0
    %140 = vmatpush1.msra.mxu0 %v126
    %141 = vmatprep.subr.mxu0 0.0
    %142 = vmatpush1.msra.mxu0 %v127
    %143 = vmatprep.subr.mxu0 0.0
    %144 = vmatpush1.msra.mxu0 0.0
    %145 = vmatprep.subr.mxu0 0.0
    %146 = vmatpush1.msra.mxu0 0.0
    %147 = vmatprep.subr.mxu0 0.0
    %148 = vmatpush1.msra.mxu0 0.0
    %149 = vmatprep.subr.mxu0 0.0
    %150 = vmatpush1.msra.mxu0 0.0
    %151 = vmatprep.subr.mxu0 0.0
    %152 = vmatpush1.msra.mxu0 0.0
    %153 = vmatprep.subr.mxu0 0.0
    %154 = vmatpush1.msra.mxu0 0.0
    %155 = vmatprep.subr.mxu0 0.0
    %156 = vmatpush1.msra.mxu0 0.0
    %157 = vmatprep.subr.mxu0 0.0
    %158 = vmatpush1.msra.mxu0 0.0
    %159 = vmatprep.subr.mxu0 0.0
    %160 = vmatpush1.msra.mxu0 0.0
    %161 = vmatprep.subr.mxu0 0.0
    %162 = vmatpush1.msra.mxu0 0.0
    %163 = vmatprep.subr.mxu0 0.0
    %164 = vmatpush1.msra.mxu0 0.0
    %165 = vmatprep.subr.mxu0 0.0
    %166 = vmatpush1.msra.mxu0 0.0
    %167 = vmatprep.subr.mxu0 0.0
    %168 = vmatpush1.msra.mxu0 0.0
    %169 = vmatprep.subr.mxu0 0.0
    %170 = vmatpush1.msra.mxu0 0.0
    %171 = vmatprep.subr.mxu0 0.0
    %172 = vmatpush1.msra.mxu0 0.0
    %173 = vmatprep.subr.mxu0 0.0
    %174 = vmatpush1.msra.mxu0 0.0
    %175 = vmatprep.subr.mxu0 0.0
    %176 = vmatpush1.msra.mxu0 0.0
    %177 = vmatprep.subr.mxu0 0.0
    %178 = vmatpush1.msra.mxu0 0.0
    %179 = vmatprep.subr.mxu0 0.0
    %180 = vmatpush1.msra.mxu0 0.0
    %181 = vmatprep.subr.mxu0 0.0
    %182 = vmatpush1.msra.mxu0 0.0
    %183 = vmatprep.subr.mxu0 0.0
    %184 = vmatpush1.msra.mxu0 0.0
    %185 = vmatprep.subr.mxu0 0.0
    %186 = vmatpush1.msra.mxu0 0.0
    %187 = vmatprep.subr.mxu0 0.0
    %188 = vmatpush1.msra.mxu0 0.0
    %189 = vmatprep.subr.mxu0 0.0
    %190 = vmatpush1.msra.mxu0 0.0
    %191 = vmatprep.subr.mxu0 0.0
    %192 = vmatpush1.msra.mxu0 0.0
    %193 = vmatprep.subr.mxu0 0.0
    %194 = vmatpush1.msra.mxu0 0.0
    %195 = vmatprep.subr.mxu0 0.0
    %196 = vmatpush1.msra.mxu0 0.0
    %197 = vmatprep.subr.mxu0 0.0
    %198 = vmatpush1.msra.mxu0 0.0
    %199 = vmatprep.subr.mxu0 0.0
    %200 = vmatpush1.msra.mxu0 0.0
    %201 = vmatprep.subr.mxu0 0.0
    %202 = vmatpush1.msra.mxu0 0.0
    %203 = vmatprep.mubr.f32.mxu0 0.0
    %204 = vmatmul.mubr.f32.gmra.mrb[0].mxu0 %v137
    %v205 = vpop.f32.mrb[0].mxu0
    %v206 = vadd.f32 %v133, %v205
    %v207 = vpop.f32.mrb[0].mxu0
    %208 = vdwg.mxu0
    %v209 = vxor.u32 %v206, 2147483648
    %v210 = vmul.f32 %v209, 1.442695
    %v211 = vpow.pop %v210
    %v212 = vadd.f32 %v211, 1.0
    %v213 = vrcp.pop %v212
    %v214 = vmul.f32 1.0, %v213
    %v215 = vld [vmem:[%s5] sm:$0x1]
    %v216 = vld [vmem:[#allocation2] sm:$0x1]
    %218 = vset.pattern.permute.xlu0 0
    %219 = vperm.xlu0 %218, %v216
    %v220 = vpop.permute.xlu0 %219
    %v222 = vlaneseq
    %v223 = vshrl.u32 %v222, 7
    %v224 = vsub.s32 0, %v223
    %v225 = vrot.slane %v220, %v224
    %vm226 = vcmask 31744
    %v228 = vsel %vm226, %v215, 0
    %vm230 = vcmask 1043456
    %v232 = vsel %vm230, %v214, 0
    %234 = vmatprep.subr.mxu0 0.0
    %235 = vmatpush1.msra.mxu0 %v232
    %236 = vmatprep.subr.mxu0 0.0
    %237 = vmatpush1.msra.mxu0 0.0
    %238 = vmatprep.subr.mxu0 0.0
    %239 = vmatpush1.msra.mxu0 0.0
    %240 = vmatprep.subr.mxu0 0.0
    %241 = vmatpush1.msra.mxu0 0.0
    %242 = vmatprep.subr.mxu0 0.0
    %243 = vmatpush1.msra.mxu0 0.0
    %244 = vmatprep.subr.mxu0 0.0
    %245 = vmatpush1.msra.mxu0 0.0
    %246 = vmatprep.subr.mxu0 0.0
    %247 = vmatpush1.msra.mxu0 0.0
    %248 = vmatprep.subr.mxu0 0.0
    %249 = vmatpush1.msra.mxu0 0.0
    %250 = vmatprep.subr.mxu0 0.0
    %251 = vmatpush1.msra.mxu0 0.0
    %252 = vmatprep.subr.mxu0 0.0
    %253 = vmatpush1.msra.mxu0 0.0
    %254 = vmatprep.subr.mxu0 0.0
    %255 = vmatpush1.msra.mxu0 0.0
    %256 = vmatprep.subr.mxu0 0.0
    %257 = vmatpush1.msra.mxu0 0.0
    %258 = vmatprep.subr.mxu0 0.0
    %259 = vmatpush1.msra.mxu0 0.0
    %260 = vmatprep.subr.mxu0 0.0
    %261 = vmatpush1.msra.mxu0 0.0
    %262 = vmatprep.subr.mxu0 0.0
    %263 = vmatpush1.msra.mxu0 0.0
    %264 = vmatprep.subr.mxu0 0.0
    %265 = vmatpush1.msra.mxu0 0.0
    %266 = vmatprep.subr.mxu0 0.0
    %267 = vmatpush1.msra.mxu0 0.0
    %268 = vmatprep.subr.mxu0 0.0
    %269 = vmatpush1.msra.mxu0 0.0
    %270 = vmatprep.subr.mxu0 0.0
    %271 = vmatpush1.msra.mxu0 0.0
    %272 = vmatprep.subr.mxu0 0.0
    %273 = vmatpush1.msra.mxu0 0.0
    %274 = vmatprep.subr.mxu0 0.0
    %275 = vmatpush1.msra.mxu0 0.0
    %276 = vmatprep.subr.mxu0 0.0
    %277 = vmatpush1.msra.mxu0 0.0
    %278 = vmatprep.subr.mxu0 0.0
    %279 = vmatpush1.msra.mxu0 0.0
    %280 = vmatprep.subr.mxu0 0.0
    %281 = vmatpush1.msra.mxu0 0.0
    %282 = vmatprep.subr.mxu0 0.0
    %283 = vmatpush1.msra.mxu0 0.0
    %284 = vmatprep.subr.mxu0 0.0
    %285 = vmatpush1.msra.mxu0 0.0
    %286 = vmatprep.subr.mxu0 0.0
    %287 = vmatpush1.msra.mxu0 0.0
    %288 = vmatprep.subr.mxu0 0.0
    %289 = vmatpush1.msra.mxu0 0.0
    %290 = vmatprep.subr.mxu0 0.0
    %291 = vmatpush1.msra.mxu0 0.0
    %292 = vmatprep.subr.mxu0 0.0
    %293 = vmatpush1.msra.mxu0 0.0
    %294 = vmatprep.subr.mxu0 0.0
    %295 = vmatpush1.msra.mxu0 0.0
    %296 = vmatprep.subr.mxu0 0.0
    %297 = vmatpush1.msra.mxu0 0.0
    %298 = vmatprep.mubr.f32.mxu0 0.0
    %299 = vmatmul.mubr.f32.gmra.mrb[0].mxu0 %v228
    %v300 = vpop.f32.mrb[0].mxu0
    %v301 = vadd.f32 %v225, %v300
    %v302 = vpop.f32.mrb[0].mxu0
    %303 = vdwg.mxu0
    %304 = vst [vmem:[#allocation3] sm:$0x1] %v301
    // Predicated region
    $region30: #{tpu_custom_call.1} parent=1 // pred_check
      _
    $region31: #{tpu_custom_call.1} parent=1 // pred_check_branch
      %306 = sbr.rel (0) target = $region33
    $region32: #{tpu_custom_call.1} parent=1 // pred_region
      %s308 = ssub.s32 16, 16
      %309 = vsyncadd [#allocation4], %s308
      %s311 = sshll.u32 [#allocation3], 4
      %s312 = int_to_ptr.vmem [resolvable:$true] %s311
      %314 = dma.vmem_to_hbm [thread:$0]  %s312, 16, %s7, [#allocation4]
    $region33: #{tpu_custom_call.1} parent=1 // pred_fallthru
      _
    // Predicated region
    $region34: #{tpu_custom_call.1} parent=1 // pred_check
      _
    $region35: #{tpu_custom_call.1} parent=1 // pred_check_branch
      %316 = sbr.rel (0) target = $region37
    $region36: #{tpu_custom_call.1} parent=1 // pred_region
      %317 = dma.done [#allocation4], 16
    $region37: #{tpu_custom_call.1} parent=1 // pred_fallthru
      _
    %318 = vsyncpa [#allocation4], 1

</llo_original>
